<compile_context>
chip_gen: v7x
topology: tpu7x:2x2x1
jax: 0.10.0
libtpu: 0.0.40
codegen_flags: <defaults>
</compile_context>

<pallas_src>
import functools
import numpy as np
import jax
import jax.numpy as jnp
from jax.experimental import pallas as pl
from jax.experimental.pallas import tpu as pltpu


def _round_up(x, m):
    return ((x + m - 1) // m) * m


def _mosaic_params(step_bytes, resident_bytes):
    # Generous estimate: double-buffered per-step tiles + resident operands.
    need = 2 * step_bytes + 2 * resident_bytes + (4 << 20)
    limit = int(min(max(need, 16 << 20), 32 << 20))
    return pltpu.CompilerParams(dimension_semantics=("parallel",),
                                vmem_limit_bytes=limit)


# ----------------------------------------------------------------------------- #
# Pallas kernels
# ----------------------------------------------------------------------------- #
def _dft_matmul_kernel(a_ref, b_ref, o_ref):
    # frames tile @ (resident) forward DFT basis -> real|imag spectrum slab
    o_ref[...] = jnp.dot(a_ref[...], b_ref[...],
                         preferred_element_type=jnp.float32)


def stft_rows_matmul(frames_pad, basis, tile_rows):
    """(M_pad, n_fft) @ (n_fft, 2*Kp) -> (M_pad, 2*Kp) f32, tiled over rows."""
    m_pad, n_fft = frames_pad.shape
    _, n_out = basis.shape
    assert m_pad % tile_rows == 0
    step_bytes = (tile_rows * n_fft * frames_pad.dtype.itemsize
                  + tile_rows * n_out * 4)
    resident_bytes = n_fft * n_out * basis.dtype.itemsize
    return pl.pallas_call(
        _dft_matmul_kernel,
        out_shape=jax.ShapeDtypeStruct((m_pad, n_out), jnp.float32),
        grid_spec=pltpu.PrefetchScalarGridSpec(
            num_scalar_prefetch=0,
            grid=(m_pad // tile_rows,),
            in_specs=[pl.BlockSpec((tile_rows, n_fft), lambda i: (i, 0)),
                      pl.BlockSpec((n_fft, n_out), lambda i: (0, 0))],
            out_specs=pl.BlockSpec((tile_rows, n_out), lambda i: (i, 0))),
        compiler_params=_mosaic_params(step_bytes, resident_bytes),
    )(frames_pad, basis)


def _mask_istft_kernel(threshold, k_pad,
                       s1_ref, s2_ref, nc_ref, nc_sq_ref, invr_ref, invi_ref,
                       f1_ref, f2_ref):
    # Spectrum slabs: lanes [0:k_pad) real, [k_pad:2*k_pad) imag (128-aligned).
    r1 = s1_ref[:, :k_pad]
    i1 = s1_ref[:, k_pad:]
    r2 = s2_ref[:, :k_pad]
    i2 = s2_ref[:, k_pad:]
    nc = nc_ref[...]            # (1, Kp) broadcasts over the row tile
    nc_sq = nc_sq_ref[...]      # precomputed nc*nc

    # cross / auto power spectra (complex arithmetic on real/imag parts)
    cp_r = r1 * r2 + i1 * i2            # Re{X1 * conj(X2)}
    cp_i = i1 * r2 - r1 * i2            # Im{X1 * conj(X2)}
    ap1 = r1 * r1 + i1 * i1             # |X1|^2
    ap2 = r2 * r2 + i2 * i2             # |X2|^2

    inv_denom = pl.reciprocal(jnp.sqrt(ap1 * ap2) + 1e-10, approx=True)
    sc_r = cp_r * inv_denom             # spatial coherence (complex)
    sc_i = cp_i * inv_denom

    rsc = sc_r                          # Re{spatial coherence}
    rsc_sq = rsc * rsc
    asc_sq = sc_r * sc_r + sc_i * sc_i  # |spatial coherence|^2

    # CDR correction term (NaN for negative radicand, exactly like torch.sqrt)
    correction = jnp.sqrt(nc_sq * rsc_sq - nc_sq * asc_sq + nc_sq
                          - 2.0 * nc * rsc + asc_sq)
    numerator = nc * rsc - asc_sq - correction
    denominator = asc_sq - 1.0
    cdr = numerator * pl.reciprocal(denominator + 1e-10, approx=True)
    diffuseness = pl.reciprocal(cdr + 1.0, approx=True)
    mask = (diffuseness < threshold).astype(jnp.float32)   # NaN < t -> 0.0

    # Fused iSTFT DFT: masked spectra go straight to the MXU, never to HBM.
    invr = invr_ref[...]
    invi = invi_ref[...]
    mxu_dt = invr.dtype
    f1_ref[...] = (
        jnp.dot((r1 * mask).astype(mxu_dt), invr, preferred_element_type=jnp.float32)
        + jnp.dot((i1 * mask).astype(mxu_dt), invi, preferred_element_type=jnp.float32))
    f2_ref[...] = (
        jnp.dot((r2 * mask).astype(mxu_dt), invr, preferred_element_type=jnp.float32)
        + jnp.dot((i2 * mask).astype(mxu_dt), invi, preferred_element_type=jnp.float32))


def mask_istft_fused(spec1_pad, spec2_pad, nc_row, nc_sq_row,
                     inv_r_basis, inv_i_basis, threshold, tile_rows):
    """CDR mask + inverse-DFT matmul, fused and tiled over frame rows."""
    m_pad, two_kp = spec1_pad.shape
    k_pad = two_kp // 2
    n_fft = inv_r_basis.shape[1]
    assert m_pad % tile_rows == 0
    step_bytes = 2 * tile_rows * two_kp * 4 + 2 * tile_rows * n_fft * 4
    resident_bytes = (2 * k_pad * n_fft * inv_r_basis.dtype.itemsize
                      + 2 * k_pad * 4)
    spec_tile = pl.BlockSpec((tile_rows, two_kp), lambda i: (i, 0))
    vec_spec = pl.BlockSpec((1, k_pad), lambda i: (0, 0))
    basis_spec = pl.BlockSpec((k_pad, n_fft), lambda i: (0, 0))
    out_tile = pl.BlockSpec((tile_rows, n_fft), lambda i: (i, 0))
    out_sd = jax.ShapeDtypeStruct((m_pad, n_fft), jnp.float32)
    return pl.pallas_call(
        functools.partial(_mask_istft_kernel, float(threshold), k_pad),
        out_shape=(out_sd, out_sd),
        grid_spec=pltpu.PrefetchScalarGridSpec(
            num_scalar_prefetch=0,
            grid=(m_pad // tile_rows,),
            in_specs=[spec_tile, spec_tile, vec_spec, vec_spec,
                      basis_spec, basis_spec],
            out_specs=(out_tile, out_tile)),
        compiler_params=_mosaic_params(step_bytes, resident_bytes),
    )(spec1_pad, spec2_pad, nc_row, nc_sq_row, inv_r_basis, inv_i_basis)


# ----------------------------------------------------------------------------- #
# DiffusenessMask module (JAX wrapper around the Pallas kernels)
# ----------------------------------------------------------------------------- #
class DiffusenessMask:
    """CDR diffuse-noise mask front-end (torch.stft/istft semantics).

    tile_rows : frame-row tile for both gridded kernels (256 suits v6e/v7x,
                use 128 on v5e).
    mxu_dtype : dtype fed to the MXU for the DFT matmuls; jnp.bfloat16 gives
                2-4x matmul throughput on v6e/v7x (float32 default keeps
                closest parity with the PyTorch reference).
    """

    def __init__(self, threshold=0.2, n_fft=512, hop_length=256,
                 tile_rows=256, mxu_dtype=jnp.float32):
        self.d = 0.5
        self.c = 343.0
        self.threshold = threshold
        self.n_fft = n_fft
        self.hop = hop_length
        self.tile_rows = tile_rows
        self.mxu_dtype = mxu_dtype

        K = n_fft // 2 + 1
        Kp = _round_up(K, 128)            # lane-pad frequency bins to 128
        self.K = K
        self.k_pad = Kp

        n = np.arange(n_fft)
        f = np.arange(K)
        ang = 2.0 * np.pi * np.outer(n, f) / n_fft               # (n_fft, K)

        # forward onesided DFT basis, zero-padded to 2*Kp lanes:
        #   columns [0:Kp) -> real part, [Kp:2Kp) -> imag part
        fwd = np.zeros((n_fft, 2 * Kp), np.float32)
        fwd[:, :K] = np.cos(ang)
        fwd[:, Kp:Kp + K] = -np.sin(ang)
        self.fwd_basis = jnp.asarray(fwd).astype(mxu_dtype)

        # inverse (irfft) bases, Hermitian-symmetric reconstruction;
        # padded frequency rows are zero so garbage lanes cannot leak.
        w = np.ones(K)
        if K > 2:
            w[1:-1] = 2.0
        inv_r = np.zeros((Kp, n_fft), np.float32)
        inv_i = np.zeros((Kp, n_fft), np.float32)
        inv_r[:K] = (w[:, None] / n_fft) * np.cos(ang.T)
        inv_i[:K] = -(w[:, None] / n_fft) * np.sin(ang.T)
        self.inv_r_basis = jnp.asarray(inv_r).astype(mxu_dtype)
        self.inv_i_basis = jnp.asarray(inv_i).astype(mxu_dtype)

        # diffuse-field (sinc) noise coherence; padded lanes are zero.
        fs = 2 * (K - 1)
        f_k = np.linspace(0.0, fs / 2.0, K)
        arg = 2.0 * np.pi * f_k * self.d / self.c
        nc = np.abs(np.sin(arg) / (arg + 1e-10))
        nc_row = np.zeros((1, Kp), np.float32)
        nc_row[0, :K] = nc
        self.noise_coherence = jnp.asarray(nc_row)
        self.noise_coherence_sq = jnp.asarray(nc_row * nc_row)

    # --- STFT framing glue (torch.stft: center=True, reflect pad, rect window) ---
    def _frames(self, x):
        p = self.n_fft // 2
        xp = jnp.pad(x, ((0, 0), (p, p)), mode="reflect")
        T = x.shape[-1]
        F = 1 + T // self.hop
        idx = np.arange(F)[:, None] * self.hop + np.arange(self.n_fft)[None, :]
        return xp[:, idx]                                      # (B, F, n_fft)

    # TODO(synk): reflect-pad / frame gather / overlap-add scatter stay in plain
    # JAX (no clean rectangular-BlockSpec Pallas equivalent for the scatter-add).
    def _overlap_add(self, frames):
        B, F, n_fft = frames.shape
        L = n_fft + (F - 1) * self.hop
        idx = (np.arange(F)[:, None] * self.hop
               + np.arange(n_fft)[None, :]).reshape(-1)
        y = jnp.zeros((B, L), jnp.float32).at[:, idx].add(
            frames.reshape(B, F * n_fft))
        env = jnp.zeros((L,), jnp.float32).at[idx].add(
            jnp.ones((F * n_fft,), jnp.float32))               # rect-window^2 OLA
        y = y / env[None, :]
        p = n_fft // 2
        return y[:, p:p + (F - 1) * self.hop]                  # torch.istft center trim

    def __call__(self, x1, x2):
        x1 = jnp.squeeze(x1, axis=1).astype(jnp.float32)
        x2 = jnp.squeeze(x2, axis=1).astype(jnp.float32)
        B = x1.shape[0]

        frames1 = self._frames(x1)                             # (B, F, n_fft)
        frames2 = self._frames(x2)
        F = frames1.shape[1]
        M = B * F

        # One row tiling shared by both Pallas stages so the (row-padded)
        # spectra are handed straight from the STFT kernel to the fused
        # mask+iSTFT kernel with no intermediate slicing.
        tm = min(self.tile_rows, _round_up(M, 16))
        m_pad = _round_up(M, tm)

        def prep(frames):
            flat = frames.reshape(M, self.n_fft).astype(self.mxu_dtype)
            return jnp.pad(flat, ((0, m_pad - M), (0, 0)))

        spec1 = stft_rows_matmul(prep(frames1), self.fwd_basis, tm)   # (m_pad, 2Kp)
        spec2 = stft_rows_matmul(prep(frames2), self.fwd_basis, tm)

        of1, of2 = mask_istft_fused(
            spec1, spec2, self.noise_coherence, self.noise_coherence_sq,
            self.inv_r_basis, self.inv_i_basis, self.threshold, tm)

        y1 = self._overlap_add(of1[:M].reshape(B, F, self.n_fft))
        y2 = self._overlap_add(of2[:M].reshape(B, F, self.n_fft))
        return y1, y2


# ----------------------------------------------------------------------------- #
if __name__ == "__main__":
    # Small shapes consistent with the module: batch=2, 1 channel, 512 samples,
    # n_fft=64, hop=32 (same structure as the default 512/256 config, scaled down).
    B, T = 2, 512
    n_fft, hop = 64, 32

    key = jax.random.PRNGKey(0)
    k1, k2 = jax.random.split(key)
    x1 = jax.random.normal(k1, (B, 1, T), dtype=jnp.float32)
    x2 = jax.random.normal(k2, (B, 1, T), dtype=jnp.float32)

    module = DiffusenessMask(threshold=0.2, n_fft=n_fft, hop_length=hop)
    y1, y2 = module(x1, x2)
    y1 = jax.block_until_ready(y1)
    y2 = jax.block_until_ready(y2)

    assert y1.shape == (B, (T // hop) * hop) and y2.shape == y1.shape
    assert bool(jnp.all(jnp.isfinite(y1))) and bool(jnp.all(jnp.isfinite(y2)))
    print("KERNEL_OK")
</pallas_src>

<mosaic_0001>
module attributes {stable_mosaic.version = 11 : i64} {
  func.func @_dft_matmul_kernel(%arg0: i32, %arg1: memref<48x64xf32, #tpu.memory_space<vmem>>, %arg2: memref<64x256xf32, #tpu.memory_space<vmem>>, %arg3: memref<48x256xf32, #tpu.memory_space<vmem>>) attributes {dimension_semantics = [#tpu.dimension_semantics<parallel>], iteration_bounds = array<i64: 1>, scalar_prefetch = 0 : i64, scratch_operands = 0 : i64, tpu.core_type = #tpu.core_type<tc>, window_params = [{transform_indices = @transform_0, window_bounds = array<i64: 48, 64>}, {pipeline_mode = #tpu.pipeline_mode<synchronous>, transform_indices = @transform_1, window_bounds = array<i64: 64, 256>}, {transform_indices = @transform_2, window_bounds = array<i64: 48, 256>}]} {
    %c0 = arith.constant 0 : index
    %c0_0 = arith.constant 0 : index
    %0 = vector.load %arg1[%c0, %c0_0] : memref<48x64xf32, #tpu.memory_space<vmem>>, vector<48x64xf32>
    %c0_1 = arith.constant 0 : index
    %c0_2 = arith.constant 0 : index
    %1 = vector.load %arg2[%c0_1, %c0_2] : memref<64x256xf32, #tpu.memory_space<vmem>>, vector<64x256xf32>
    %cst = arith.constant dense<0.000000e+00> : vector<48x256xf32>
    %2 = tpu.matmul %0, %1, %cst {dimension_numbers = #tpu.dot_dimension_numbers<[1], [0], [0], [1], [0, 0, 1, 1], [], []>} : vector<48x64xf32>, vector<64x256xf32>, vector<48x256xf32> -> vector<48x256xf32>
    %c0_3 = arith.constant 0 : index
    %c0_4 = arith.constant 0 : index
    %3 = vector.load %arg3[%c0_3, %c0_4] : memref<48x256xf32, #tpu.memory_space<vmem>>, vector<48x256xf32>
    tpu.vector_store %arg3[%c0_3, %c0_4], %2 {strides = array<i32>} : memref<48x256xf32, #tpu.memory_space<vmem>>, vector<48x256xf32>,
    return
  }
  func.func @transform_0(%arg0: i32) -> (i32, i32) {
    %c0_i32 = arith.constant 0 : i32
    %c0_i32_0 = arith.constant 0 : i32
    return %arg0, %c0_i32 : i32, i32
  }
  func.func @transform_1(%arg0: i32) -> (i32, i32) {
    %c0_i32 = arith.constant 0 : i32
    %c0_i32_0 = arith.constant 0 : i32
    %c0_i32_1 = arith.constant 0 : i32
    return %c0_i32, %c0_i32_0 : i32, i32
  }
  func.func @transform_2(%arg0: i32) -> (i32, i32) {
    %c0_i32 = arith.constant 0 : i32
    %c0_i32_0 = arith.constant 0 : i32
    return %arg0, %c0_i32 : i32, i32
  }
}

</mosaic_0001>

<llo_original>
// kernel: tpu_custom_call.1
$region0: #{tpu_custom_call.1}
  #allocation0 [shape = 'u32[]', space=smem, size = 0x4, offset = 0x4, fixed_abs, tag = 'smem constant byte address 0x4 - core index']
  #allocation1 [shape = 'u32[144,128]{1,0:T(1,128)}', space=vmem, size = 0x12000, scoped, tag = 'internal scratch']
  %s0 = inlined_call_operand.hbm [shape: f32[48,64], index: 0, kind: input, shape index: {}]
  %s1 = inlined_call_operand.hbm [shape: f32[64,256], index: 1, kind: input, shape index: {}]
  %s2 = inlined_call_operand.hbm [shape: f32[48,256], index: 2, kind: output, shape index: {}]
  %s3 = sld [smem:[#allocation0]]
  $region26: #{tpu_custom_call.1} parent=0
    _
  %s5 = ssub.s32 1, %s3
  %s6 = scalar_select 0, %s5, %s3
  $region1: #{tpu_custom_call.1} parent=0
    #allocation2 [shape = 'u8[24576]{0}', space=vmem, size = 0x6000, scoped, tag = 'input window, operand 0, single buffered']
    #allocation3 [shape = 's32[1]{0}', space=sflag, size = 0x4, scoped, tag = 'scoped memory for tpu_custom_call.1']
    #allocation4 [shape = 's32[1]{0}', space=sflag, size = 0x4, scoped, tag = 'scoped memory for tpu_custom_call.1']
    #allocation5 [shape = 'u8[65536]{0}', space=vmem, size = 0x10000, scoped, tag = 'input window, operand 1, single buffered']
    #allocation6 [shape = 's32[1]{0}', space=sflag, size = 0x4, scoped, tag = 'scoped memory for tpu_custom_call.1']
    #allocation7 [shape = 'u8[49152]{0}', space=vmem, size = 0xc000, scoped, tag = 'output window, operand 0, single buffered']
    %7 = vsyncpa [#allocation3], 0
    %8 = vsyncpa [#allocation6], 0
    %9 = vsyncpa [#allocation4], 0
    // Predicated region
    $region2: #{tpu_custom_call.1} parent=1 // pred_check
      _
    $region3: #{tpu_custom_call.1} parent=1 // pred_check_branch
      %11 = sbr.rel (0) target = $region5
    $region4: #{tpu_custom_call.1} parent=1 // pred_region
      %s13 = ssub.s32 768, 768
      %14 = vsyncadd [#allocation3], %s13
      %s15 = sshll.u32 [#allocation2], 4
      %s16 = int_to_ptr.vmem [resolvable:$true] %s15
      %21 = dma.hbm_to_vmem [thread:$0]  %s0, 768, %s16, [#allocation3], 128, 128, 8
    $region5: #{tpu_custom_call.1} parent=1 // pred_fallthru
      _
    // Predicated region
    $region6: #{tpu_custom_call.1} parent=1 // pred_check
      _
    $region7: #{tpu_custom_call.1} parent=1 // pred_check_branch
      %23 = sbr.rel (0) target = $region9
    $region8: #{tpu_custom_call.1} parent=1 // pred_region
      %s25 = ssub.s32 2048, 2048
      %26 = vsyncadd [#allocation6], %s25
      %s27 = sshll.u32 [#allocation5], 4
      %s28 = int_to_ptr.vmem [resolvable:$true] %s27
      %33 = dma.hbm_to_vmem [thread:$0]  %s1, 2048, %s28, [#allocation6], 256, 256, 16
    $region9: #{tpu_custom_call.1} parent=1 // pred_fallthru
      _
    // Predicated region
    $region10: #{tpu_custom_call.1} parent=1 // pred_check
      _
    $region11: #{tpu_custom_call.1} parent=1 // pred_check_branch
      %35 = sbr.rel (0) target = $region13
    $region12: #{tpu_custom_call.1} parent=1 // pred_region
      %36 = dma.done [#allocation3], 768
    $region13: #{tpu_custom_call.1} parent=1 // pred_fallthru
      _
    // Predicated region
    $region14: #{tpu_custom_call.1} parent=1 // pred_check
      _
    $region15: #{tpu_custom_call.1} parent=1 // pred_check_branch
      %38 = sbr.rel (0) target = $region17
    $region16: #{tpu_custom_call.1} parent=1 // pred_region
      %39 = dma.done [#allocation6], 2048
    $region17: #{tpu_custom_call.1} parent=1 // pred_fallthru
      _
    %v40 = vld [vmem:[#allocation2] sm:$0xff]
    %v41 = vld [vmem:[#allocation2 + $0x8] sm:$0xff]
    %v42 = vld [vmem:[#allocation2 + $0x10] sm:$0xff]
    %v43 = vld [vmem:[#allocation2 + $0x18] sm:$0xff]
    %v44 = vld [vmem:[#allocation2 + $0x20] sm:$0xff]
    %v45 = vld [vmem:[#allocation2 + $0x28] sm:$0xff]
    %v46 = vld [vmem:[#allocation5] sm:$0xff]
    %v47 = vld [vmem:[#allocation5 + $0x8] sm:$0xff]
    %v48 = vld [vmem:[#allocation5 + $0x10] sm:$0xff]
    %v49 = vld [vmem:[#allocation5 + $0x18] sm:$0xff]
    %v50 = vld [vmem:[#allocation5 + $0x20] sm:$0xff]
    %v51 = vld [vmem:[#allocation5 + $0x28] sm:$0xff]
    %v52 = vld [vmem:[#allocation5 + $0x30] sm:$0xff]
    %v53 = vld [vmem:[#allocation5 + $0x38] sm:$0xff]
    %v54 = vld [vmem:[#allocation5 + $0x40] sm:$0xff]
    %v55 = vld [vmem:[#allocation5 + $0x48] sm:$0xff]
    %v56 = vld [vmem:[#allocation5 + $0x50] sm:$0xff]
    %v57 = vld [vmem:[#allocation5 + $0x58] sm:$0xff]
    %v58 = vld [vmem:[#allocation5 + $0x60] sm:$0xff]
    %v59 = vld [vmem:[#allocation5 + $0x68] sm:$0xff]
    %v60 = vld [vmem:[#allocation5 + $0x70] sm:$0xff]
    %v61 = vld [vmem:[#allocation5 + $0x78] sm:$0xff]
    %vm62 = vcmask 523264
    %v64 = vsel %vm62, %v40, 0
    %v67 = vsel %vm62, %v41, 0
    %v70 = vsel %vm62, %v42, 0
    %v73 = vsel %vm62, %v43, 0
    %v76 = vsel %vm62, %v44, 0
    %v79 = vsel %vm62, %v45, 0
    %81 = vmatprep.subr.mxu0 %v47
    %82 = vmatpush1.msra.mxu0 %v46
    %83 = vmatprep.subr.mxu0 %v49
    %84 = vmatpush1.msra.mxu0 %v48
    %85 = vmatprep.subr.mxu0 %v51
    %86 = vmatpush1.msra.mxu0 %v50
    %87 = vmatprep.subr.mxu0 %v53
    %88 = vmatpush1.msra.mxu0 %v52
    %89 = vmatprep.subr.mxu0 %v55
    %90 = vmatpush1.msra.mxu0 %v54
    %91 = vmatprep.subr.mxu0 %v57
    %92 = vmatpush1.msra.mxu0 %v56
    %93 = vmatprep.subr.mxu0 %v59
    %94 = vmatpush1.msra.mxu0 %v58
    %95 = vmatprep.subr.mxu0 %v61
    %96 = vmatpush1.msra.mxu0 %v60
    %97 = vmatprep.subr.mxu0 0.0
    %98 = vmatpush1.msra.mxu0 0.0
    %99 = vmatprep.subr.mxu0 0.0
    %100 = vmatpush1.msra.mxu0 0.0
    %101 = vmatprep.subr.mxu0 0.0
    %102 = vmatpush1.msra.mxu0 0.0
    %103 = vmatprep.subr.mxu0 0.0
    %104 = vmatpush1.msra.mxu0 0.0
    %105 = vmatprep.subr.mxu0 0.0
    %106 = vmatpush1.msra.mxu0 0.0
    %107 = vmatprep.subr.mxu0 0.0
    %108 = vmatpush1.msra.mxu0 0.0
    %109 = vmatprep.subr.mxu0 0.0
    %110 = vmatpush1.msra.mxu0 0.0
    %111 = vmatprep.subr.mxu0 0.0
    %112 = vmatpush1.msra.mxu0 0.0
    %113 = vmatprep.subr.mxu0 0.0
    %114 = vmatpush1.msra.mxu0 0.0
    %115 = vmatprep.subr.mxu0 0.0
    %116 = vmatpush1.msra.mxu0 0.0
    %117 = vmatprep.subr.mxu0 0.0
    %118 = vmatpush1.msra.mxu0 0.0
    %119 = vmatprep.subr.mxu0 0.0
    %120 = vmatpush1.msra.mxu0 0.0
    %121 = vmatprep.subr.mxu0 0.0
    %122 = vmatpush1.msra.mxu0 0.0
    %123 = vmatprep.subr.mxu0 0.0
    %124 = vmatpush1.msra.mxu0 0.0
    %125 = vmatprep.subr.mxu0 0.0
    %126 = vmatpush1.msra.mxu0 0.0
    %127 = vmatprep.subr.mxu0 0.0
    %128 = vmatpush1.msra.mxu0 0.0
    %129 = vmatprep.subr.mxu0 0.0
    %130 = vmatpush1.msra.mxu0 0.0
    %131 = vmatprep.subr.mxu0 0.0
    %132 = vmatpush1.msra.mxu0 0.0
    %133 = vmatprep.subr.mxu0 0.0
    %134 = vmatpush1.msra.mxu0 0.0
    %135 = vmatprep.subr.mxu0 0.0
    %136 = vmatpush1.msra.mxu0 0.0
    %137 = vmatprep.subr.mxu0 0.0
    %138 = vmatpush1.msra.mxu0 0.0
    %139 = vmatprep.subr.mxu0 0.0
    %140 = vmatpush1.msra.mxu0 0.0
    %141 = vmatprep.subr.mxu0 0.0
    %142 = vmatpush1.msra.mxu0 0.0
    %143 = vmatprep.subr.mxu0 0.0
    %144 = vmatpush1.msra.mxu0 0.0
    %145 = vmatprep.mubr.f32.mxu0 0.0
    %146 = vmatmul.mubr.f32.gmra.mrb[0].mxu0 %v64
    %v147 = vpop.f32.mrb[0].mxu0
    %v148 = vadd.f32 0.0, %v147
    %v149 = vpop.f32.mrb[0].mxu0
    %v150 = vadd.f32 0.0, %v149
    %151 = vmatprep.mubr.f32.mxu0 0.0
    %152 = vmatmul.mubr.f32.gmra.mrb[0].mxu0 %v67
    %v153 = vpop.f32.mrb[0].mxu0
    %v154 = vadd.f32 0.0, %v153
    %v155 = vpop.f32.mrb[0].mxu0
    %v156 = vadd.f32 0.0, %v155
    %157 = vmatprep.mubr.f32.mxu0 0.0
    %158 = vmatmul.mubr.f32.gmra.mrb[0].mxu0 %v70
    %v159 = vpop.f32.mrb[0].mxu0
    %v160 = vadd.f32 0.0, %v159
    %v161 = vpop.f32.mrb[0].mxu0
    %v162 = vadd.f32 0.0, %v161
    %163 = vmatprep.mubr.f32.mxu0 0.0
    %164 = vmatmul.mubr.f32.gmra.mrb[0].mxu0 %v73
    %v165 = vpop.f32.mrb[0].mxu0
    %v166 = vadd.f32 0.0, %v165
    %v167 = vpop.f32.mrb[0].mxu0
    %v168 = vadd.f32 0.0, %v167
    %169 = vmatprep.mubr.f32.mxu0 0.0
    %170 = vmatmul.mubr.f32.gmra.mrb[0].mxu0 %v76
    %v171 = vpop.f32.mrb[0].mxu0
    %v172 = vadd.f32 0.0, %v171
    %v173 = vpop.f32.mrb[0].mxu0
    %v174 = vadd.f32 0.0, %v173
    %175 = vmatprep.mubr.f32.mxu0 0.0
    %176 = vmatmul.mubr.f32.gmra.mrb[0].mxu0 %v79
    %v177 = vpop.f32.mrb[0].mxu0
    %v178 = vadd.f32 0.0, %v177
    %v179 = vpop.f32.mrb[0].mxu0
    %v180 = vadd.f32 0.0, %v179
    %181 = vdwg.mxu0
    %182 = vst [vmem:[#allocation7] sm:$0xff] %v148
    %183 = vst [vmem:[#allocation7 + $0x8] sm:$0xff] %v150
    %184 = vst [vmem:[#allocation7 + $0x10] sm:$0xff] %v154
    %185 = vst [vmem:[#allocation7 + $0x18] sm:$0xff] %v156
    %186 = vst [vmem:[#allocation7 + $0x20] sm:$0xff] %v160
    %187 = vst [vmem:[#allocation7 + $0x28] sm:$0xff] %v162
    %188 = vst [vmem:[#allocation7 + $0x30] sm:$0xff] %v166
    %189 = vst [vmem:[#allocation7 + $0x38] sm:$0xff] %v168
    %190 = vst [vmem:[#allocation7 + $0x40] sm:$0xff] %v172
    %191 = vst [vmem:[#allocation7 + $0x48] sm:$0xff] %v174
    %192 = vst [vmem:[#allocation7 + $0x50] sm:$0xff] %v178
    %193 = vst [vmem:[#allocation7 + $0x58] sm:$0xff] %v180
    // Predicated region
    $region18: #{tpu_custom_call.1} parent=1 // pred_check
      _
    $region19: #{tpu_custom_call.1} parent=1 // pred_check_branch
      %195 = sbr.rel (0) target = $region21
    $region20: #{tpu_custom_call.1} parent=1 // pred_region
      %s197 = ssub.s32 1536, 1536
      %198 = vsyncadd [#allocation4], %s197
      %s199 = sshll.u32 [#allocation7], 4
      %s200 = int_to_ptr.vmem [resolvable:$true] %s199
      %205 = dma.vmem_to_hbm [thread:$0]  %s200, 1536, %s2, [#allocation4], 256, 256, 16
    $region21: #{tpu_custom_call.1} parent=1 // pred_fallthru
      _
    // Predicated region
    $region22: #{tpu_custom_call.1} parent=1 // pred_check
      _
    $region23: #{tpu_custom_call.1} parent=1 // pred_check_branch
      %207 = sbr.rel (0) target = $region25
    $region24: #{tpu_custom_call.1} parent=1 // pred_region
      %208 = dma.done [#allocation4], 1536
    $region25: #{tpu_custom_call.1} parent=1 // pred_fallthru
      _
    %209 = vsyncpa [#allocation3], 1
    %210 = vsyncpa [#allocation6], 1
    %211 = vsyncpa [#allocation4], 1

</llo_original>
